<compile_context>
chip_gen: v7x
topology: tpu7x:2x2x1
jax: 0.10.0
libtpu: 0.0.40
codegen_flags: <defaults>
</compile_context>

<pallas_src>
import functools
import math

import jax
import jax.numpy as jnp
from jax.experimental import pallas as pl
from jax.experimental.pallas import tpu as pltpu


def _round_up(x, m):
    return ((x + m - 1) // m) * m


def actor_mlp_kernel(x_ref, w1_ref, b1_ref, w2_ref, b2_ref, w3_ref, b3_ref,
                     w4_ref, b4_ref, means_ref):
    """One batch tile.

    x_ref:     (TILE_B, state_dim)  -- batch-major, exactly as stored in HBM
    wN_ref:    (out_N, in_N)        -- PyTorch nn.Linear layout
    bN_ref:    (out_N, 1)           -- broadcasts along lanes (VPU)
    means_ref: (n_actions, TILE_B)  -- lane-dense output slab
    """
    x = x_ref[...]
    # Layer 1: contract the feature dim of both operands (W @ X^T) so the
    # result is feature-major (80, TILE_B) with batch on the lane axis; no
    # separate HBM transpose of x is needed.
    nt_dims = (((1,), (1,)), ((), ()))
    h1 = jnp.tanh(
        jax.lax.dot_general(w1_ref[...], x, nt_dims,
                            preferred_element_type=jnp.float32) + b1_ref[...])
    h2 = jnp.tanh(
        jnp.dot(w2_ref[...], h1, preferred_element_type=jnp.float32) + b2_ref[...])
    h3 = jnp.tanh(
        jnp.dot(w3_ref[...], h2, preferred_element_type=jnp.float32) + b3_ref[...])
    means = (
        jnp.dot(w4_ref[...], h3, preferred_element_type=jnp.float32) + b4_ref[...])
    means_ref[...] = means.astype(means_ref.dtype)


@functools.partial(jax.jit, static_argnames=("deterministic", "tile_b"))
def actor_forward(x, params, deterministic=False, tile_b=2048):
    """x: (batch, state_dim) f32.  Returns means (batch, n_actions)
    [deterministic] or (means, stds) — the parameters of Normal(means, stds)."""
    batch, state_dim = x.shape
    n_actions = params["w4"].shape[0]

    # Lane-align the batch and pick a block that evenly divides it; for small
    # batches this collapses to a single round_up(batch, 128)-wide block.
    block_b = min(tile_b, _round_up(max(batch, 1), 128))
    padded = _round_up(max(batch, 1), block_b)
    if padded != batch:
        x = jnp.pad(x, ((0, padded - batch), (0, 0)))

    def full_spec(arr):
        nd = arr.ndim
        return pl.BlockSpec(arr.shape, lambda i, _nd=nd: (0,) * _nd)

    grid = (padded // block_b,)
    means_t = pl.pallas_call(
        actor_mlp_kernel,
        out_shape=jax.ShapeDtypeStruct((n_actions, padded), jnp.float32),
        grid=grid,
        in_specs=[
            pl.BlockSpec((block_b, state_dim), lambda i: (i, 0)),
            full_spec(params["w1"]), full_spec(params["b1"]),
            full_spec(params["w2"]), full_spec(params["b2"]),
            full_spec(params["w3"]), full_spec(params["b3"]),
            full_spec(params["w4"]), full_spec(params["b4"]),
        ],
        out_specs=pl.BlockSpec((n_actions, block_b), lambda i: (0, i)),
        compiler_params=pltpu.CompilerParams(
            dimension_semantics=("parallel",)),
    )(
        x,
        params["w1"], params["b1"],
        params["w2"], params["b2"],
        params["w3"], params["b3"],
        params["w4"], params["b4"],
    )

    means = means_t[:, :batch].T  # back to (batch, n_actions); tiny transpose

    if deterministic:
        return means
    # TODO(synk): torch.distributions.Normal is returned as its parameters
    # (means, stds); sampling/log_prob have no in-kernel equivalent here.
    stds = jnp.clip(jnp.exp(params["logstds"]), 0.001, 50.0)
    return means, stds


def init_actor_params(key, state_dim, n_actions):
    """Deterministic init mimicking PyTorch nn.Linear default
    (U[-1/sqrt(fan_in), 1/sqrt(fan_in)]), stored in (out, in) layout."""
    dims = [state_dim, 80, 64, 16, n_actions]
    params = {}
    for i in range(4):
        fan_in, fan_out = dims[i], dims[i + 1]
        key, kw, kb = jax.random.split(key, 3)
        bound = 1.0 / math.sqrt(fan_in)
        params[f"w{i + 1}"] = jax.random.uniform(
            kw, (fan_out, fan_in), jnp.float32, -bound, bound)
        params[f"b{i + 1}"] = jax.random.uniform(
            kb, (fan_out, 1), jnp.float32, -bound, bound)
    params["logstds"] = jnp.full((n_actions,), 0.1, dtype=jnp.float32)
    return params


def ref_forward(x, p):
    h = jnp.tanh(x @ p["w1"].T + p["b1"][:, 0])
    h = jnp.tanh(h @ p["w2"].T + p["b2"][:, 0])
    h = jnp.tanh(h @ p["w3"].T + p["b3"][:, 0])
    return h @ p["w4"].T + p["b4"][:, 0]


if __name__ == "__main__":
    state_dim = 32
    n_actions = 4

    key = jax.random.PRNGKey(0)
    key, kx_small, kx_big = jax.random.split(key, 3)
    params = init_actor_params(key, state_dim, n_actions)

    # --- small batch (single 128-wide block, one grid step) ---
    batch = 8
    x = jax.random.normal(kx_small, (batch, state_dim), dtype=jnp.float32)

    means, stds = actor_forward(x, params, deterministic=False)
    means = jax.block_until_ready(means)
    stds = jax.block_until_ready(stds)
    means_det = jax.block_until_ready(
        actor_forward(x, params, deterministic=True))

    ref_means = ref_forward(x, params)
    ref_stds = jnp.clip(jnp.exp(params["logstds"]), 0.001, 50.0)

    assert means.shape == (batch, n_actions)
    assert stds.shape == (n_actions,)
    assert jnp.allclose(means, ref_means, atol=1e-4)
    assert jnp.allclose(means_det, ref_means, atol=1e-4)
    assert jnp.allclose(stds, ref_stds, atol=1e-6)

    # --- larger, non-aligned batch (exercises padding) ---
    big_batch = 1037
    xb = jax.random.normal(kx_big, (big_batch, state_dim), dtype=jnp.float32)
    means_big = jax.block_until_ready(
        actor_forward(xb, params, deterministic=True))
    assert means_big.shape == (big_batch, n_actions)
    assert jnp.allclose(means_big, ref_forward(xb, params), atol=1e-4)

    # --- multi-step grid (batch > tile) ---
    xs = jnp.tile(xb, (5, 1))  # 5185 rows -> multiple 2048-wide grid steps
    means_multi = jax.block_until_ready(
        actor_forward(xs, params, deterministic=True))
    assert means_multi.shape == (5 * big_batch, n_actions)
    assert jnp.allclose(means_multi[:big_batch], ref_forward(xb, params),
                        atol=1e-4)

    print("KERNEL_OK")
</pallas_src>

<mosaic_0001>
module attributes {stable_mosaic.version = 11 : i64} {
  func.func @actor_mlp_kernel(%arg0: i32, %arg1: memref<128x32xf32, #tpu.memory_space<vmem>>, %arg2: memref<80x32xf32, #tpu.memory_space<vmem>>, %arg3: memref<80x1xf32, #tpu.memory_space<vmem>>, %arg4: memref<64x80xf32, #tpu.memory_space<vmem>>, %arg5: memref<64x1xf32, #tpu.memory_space<vmem>>, %arg6: memref<16x64xf32, #tpu.memory_space<vmem>>, %arg7: memref<16x1xf32, #tpu.memory_space<vmem>>, %arg8: memref<4x16xf32, #tpu.memory_space<vmem>>, %arg9: memref<4x1xf32, #tpu.memory_space<vmem>>, %arg10: memref<4x128xf32, #tpu.memory_space<vmem>>) attributes {dimension_semantics = [#tpu.dimension_semantics<parallel>], iteration_bounds = array<i64: 1>, scalar_prefetch = 0 : i64, scratch_operands = 0 : i64, tpu.core_type = #tpu.core_type<tc>, window_params = [{transform_indices = @transform_0, window_bounds = array<i64: 128, 32>}, {pipeline_mode = #tpu.pipeline_mode<synchronous>, transform_indices = @transform_1, window_bounds = array<i64: 80, 32>}, {pipeline_mode = #tpu.pipeline_mode<synchronous>, transform_indices = @transform_2, window_bounds = array<i64: 80, 1>}, {pipeline_mode = #tpu.pipeline_mode<synchronous>, transform_indices = @transform_3, window_bounds = array<i64: 64, 80>}, {pipeline_mode = #tpu.pipeline_mode<synchronous>, transform_indices = @transform_4, window_bounds = array<i64: 64, 1>}, {pipeline_mode = #tpu.pipeline_mode<synchronous>, transform_indices = @transform_5, window_bounds = array<i64: 16, 64>}, {pipeline_mode = #tpu.pipeline_mode<synchronous>, transform_indices = @transform_6, window_bounds = array<i64: 16, 1>}, {pipeline_mode = #tpu.pipeline_mode<synchronous>, transform_indices = @transform_7, window_bounds = array<i64: 4, 16>}, {pipeline_mode = #tpu.pipeline_mode<synchronous>, transform_indices = @transform_8, window_bounds = array<i64: 4, 1>}, {transform_indices = @transform_9, window_bounds = array<i64: 4, 128>}]} {
    %c0 = arith.constant 0 : index
    %c0_0 = arith.constant 0 : index
    %0 = vector.load %arg1[%c0, %c0_0] : memref<128x32xf32, #tpu.memory_space<vmem>>, vector<128x32xf32>
    %c0_1 = arith.constant 0 : index
    %c0_2 = arith.constant 0 : index
    %1 = vector.load %arg2[%c0_1, %c0_2] : memref<80x32xf32, #tpu.memory_space<vmem>>, vector<80x32xf32>
    %cst = arith.constant dense<0.000000e+00> : vector<80x128xf32>
    %2 = tpu.matmul %1, %0, %cst {dimension_numbers = #tpu.dot_dimension_numbers<[1], [1], [0], [0], [0, 0, 1, 0], [], []>} : vector<80x32xf32>, vector<128x32xf32>, vector<80x128xf32> -> vector<80x128xf32>
    %c0_3 = arith.constant 0 : index
    %c0_4 = arith.constant 0 : index
    %3 = vector.load %arg3[%c0_3, %c0_4] : memref<80x1xf32, #tpu.memory_space<vmem>>, vector<80x1xf32>
    %4 = vector.broadcast %3 : vector<80x1xf32> to vector<80x128xf32>
    %5 = arith.addf %2, %4 : vector<80x128xf32>
    %6 = math.tanh %5 : vector<80x128xf32>
    %c0_5 = arith.constant 0 : index
    %c0_6 = arith.constant 0 : index
    %7 = vector.load %arg4[%c0_5, %c0_6] : memref<64x80xf32, #tpu.memory_space<vmem>>, vector<64x80xf32>
    %cst_7 = arith.constant dense<0.000000e+00> : vector<64x128xf32>
    %8 = tpu.matmul %7, %6, %cst_7 {dimension_numbers = #tpu.dot_dimension_numbers<[1], [0], [0], [1], [0, 0, 1, 1], [], []>} : vector<64x80xf32>, vector<80x128xf32>, vector<64x128xf32> -> vector<64x128xf32>
    %c0_8 = arith.constant 0 : index
    %c0_9 = arith.constant 0 : index
    %9 = vector.load %arg5[%c0_8, %c0_9] : memref<64x1xf32, #tpu.memory_space<vmem>>, vector<64x1xf32>
    %10 = vector.broadcast %9 : vector<64x1xf32> to vector<64x128xf32>
    %11 = arith.addf %8, %10 : vector<64x128xf32>
    %12 = math.tanh %11 : vector<64x128xf32>
    %c0_10 = arith.constant 0 : index
    %c0_11 = arith.constant 0 : index
    %13 = vector.load %arg6[%c0_10, %c0_11] : memref<16x64xf32, #tpu.memory_space<vmem>>, vector<16x64xf32>
    %cst_12 = arith.constant dense<0.000000e+00> : vector<16x128xf32>
    %14 = tpu.matmul %13, %12, %cst_12 {dimension_numbers = #tpu.dot_dimension_numbers<[1], [0], [0], [1], [0, 0, 1, 1], [], []>} : vector<16x64xf32>, vector<64x128xf32>, vector<16x128xf32> -> vector<16x128xf32>
    %c0_13 = arith.constant 0 : index
    %c0_14 = arith.constant 0 : index
    %15 = vector.load %arg7[%c0_13, %c0_14] : memref<16x1xf32, #tpu.memory_space<vmem>>, vector<16x1xf32>
    %16 = vector.broadcast %15 : vector<16x1xf32> to vector<16x128xf32>
    %17 = arith.addf %14, %16 : vector<16x128xf32>
    %18 = math.tanh %17 : vector<16x128xf32>
    %c0_15 = arith.constant 0 : index
    %c0_16 = arith.constant 0 : index
    %19 = vector.load %arg8[%c0_15, %c0_16] : memref<4x16xf32, #tpu.memory_space<vmem>>, vector<4x16xf32>
    %cst_17 = arith.constant dense<0.000000e+00> : vector<4x128xf32>
    %20 = tpu.matmul %19, %18, %cst_17 {dimension_numbers = #tpu.dot_dimension_numbers<[1], [0], [0], [1], [0, 0, 1, 1], [], []>} : vector<4x16xf32>, vector<16x128xf32>, vector<4x128xf32> -> vector<4x128xf32>
    %c0_18 = arith.constant 0 : index
    %c0_19 = arith.constant 0 : index
    %21 = vector.load %arg9[%c0_18, %c0_19] : memref<4x1xf32, #tpu.memory_space<vmem>>, vector<4x1xf32>
    %22 = vector.broadcast %21 : vector<4x1xf32> to vector<4x128xf32>
    %23 = arith.addf %20, %22 : vector<4x128xf32>
    %c0_20 = arith.constant 0 : index
    %c0_21 = arith.constant 0 : index
    %24 = vector.load %arg10[%c0_20, %c0_21] : memref<4x128xf32, #tpu.memory_space<vmem>>, vector<4x128xf32>
    tpu.vector_store %arg10[%c0_20, %c0_21], %23 {strides = array<i32>} : memref<4x128xf32, #tpu.memory_space<vmem>>, vector<4x128xf32>,
    return
  }
  func.func @transform_0(%arg0: i32) -> (i32, i32) {
    %c0_i32 = arith.constant 0 : i32
    %c0_i32_0 = arith.constant 0 : i32
    return %arg0, %c0_i32 : i32, i32
  }
  func.func @transform_1(%arg0: i32) -> (i32, i32) {
    %c0_i32 = arith.constant 0 : i32
    %c0_i32_0 = arith.constant 0 : i32
    %c0_i32_1 = arith.constant 0 : i32
    return %c0_i32, %c0_i32_0 : i32, i32
  }
  func.func @transform_2(%arg0: i32) -> (i32, i32) {
    %c0_i32 = arith.constant 0 : i32
    %c0_i32_0 = arith.constant 0 : i32
    %c0_i32_1 = arith.constant 0 : i32
    return %c0_i32, %c0_i32_0 : i32, i32
  }
  func.func @transform_3(%arg0: i32) -> (i32, i32) {
    %c0_i32 = arith.constant 0 : i32
    %c0_i32_0 = arith.constant 0 : i32
    %c0_i32_1 = arith.constant 0 : i32
    return %c0_i32, %c0_i32_0 : i32, i32
  }
  func.func @transform_4(%arg0: i32) -> (i32, i32) {
    %c0_i32 = arith.constant 0 : i32
    %c0_i32_0 = arith.constant 0 : i32
    %c0_i32_1 = arith.constant 0 : i32
    return %c0_i32, %c0_i32_0 : i32, i32
  }
  func.func @transform_5(%arg0: i32) -> (i32, i32) {
    %c0_i32 = arith.constant 0 : i32
    %c0_i32_0 = arith.constant 0 : i32
    %c0_i32_1 = arith.constant 0 : i32
    return %c0_i32, %c0_i32_0 : i32, i32
  }
  func.func @transform_6(%arg0: i32) -> (i32, i32) {
    %c0_i32 = arith.constant 0 : i32
    %c0_i32_0 = arith.constant 0 : i32
    %c0_i32_1 = arith.constant 0 : i32
    return %c0_i32, %c0_i32_0 : i32, i32
  }
  func.func @transform_7(%arg0: i32) -> (i32, i32) {
    %c0_i32 = arith.constant 0 : i32
    %c0_i32_0 = arith.constant 0 : i32
    %c0_i32_1 = arith.constant 0 : i32
    return %c0_i32, %c0_i32_0 : i32, i32
  }
  func.func @transform_8(%arg0: i32) -> (i32, i32) {
    %c0_i32 = arith.constant 0 : i32
    %c0_i32_0 = arith.constant 0 : i32
    %c0_i32_1 = arith.constant 0 : i32
    return %c0_i32, %c0_i32_0 : i32, i32
  }
  func.func @transform_9(%arg0: i32) -> (i32, i32) {
    %c0_i32 = arith.constant 0 : i32
    %c0_i32_0 = arith.constant 0 : i32
    return %c0_i32, %arg0 : i32, i32
  }
}

</mosaic_0001>

<llo_original>
// kernel: actor_forward.1
$region0: #{actor_forward.1}
  #allocation0 [shape = 'u32[]', space=smem, size = 0x4, offset = 0x4, fixed_abs, tag = 'smem constant byte address 0x4 - core index']
  #allocation1 [shape = 'u32[144,128]{1,0:T(1,128)}', space=vmem, size = 0x12000, scoped, tag = 'internal scratch']
  %s0 = inlined_call_operand.vmem [shape: f32[128,32], index: 0, kind: input, shape index: {}]
  %s1 = inlined_call_operand.vmem [shape: f32[80,32], index: 1, kind: input, shape index: {}]
  %s2 = inlined_call_operand.vmem [shape: f32[80,1], index: 2, kind: input, shape index: {}]
  %s3 = inlined_call_operand.vmem [shape: f32[64,80], index: 3, kind: input, shape index: {}]
  %s4 = inlined_call_operand.vmem [shape: f32[64,1], index: 4, kind: input, shape index: {}]
  %s5 = inlined_call_operand.vmem [shape: f32[16,64], index: 5, kind: input, shape index: {}]
  %s6 = inlined_call_operand.vmem [shape: f32[16,1], index: 6, kind: input, shape index: {}]
  %s7 = inlined_call_operand.vmem [shape: f32[4,16], index: 7, kind: input, shape index: {}]
  %s8 = inlined_call_operand.vmem [shape: f32[4,1], index: 8, kind: input, shape index: {}]
  %s9 = inlined_call_operand.vmem [shape: f32[4,128], index: 9, kind: output, shape index: {}]
  %s10 = sld [smem:[#allocation0]]
  $region46: #{actor_forward.1} parent=0
    _
  %s12 = ssub.s32 1, %s10
  %s13 = scalar_select 0, %s12, %s10
  // Predicated region
  $region2: #{actor_forward.1} parent=0 // pred_check
    _
  $region3: #{actor_forward.1} parent=0 // pred_check_branch
    %15 = sbr.rel (0) target = $region5
  $region4: #{actor_forward.1} parent=0 // pred_region
    _
  $region5: #{actor_forward.1} parent=0 // pred_fallthru
    _
  // Predicated region
  $region6: #{actor_forward.1} parent=0 // pred_check
    _
  $region7: #{actor_forward.1} parent=0 // pred_check_branch
    %17 = sbr.rel (0) target = $region9
  $region8: #{actor_forward.1} parent=0 // pred_region
    _
  $region9: #{actor_forward.1} parent=0 // pred_fallthru
    _
  // Predicated region
  $region10: #{actor_forward.1} parent=0 // pred_check
    _
  $region11: #{actor_forward.1} parent=0 // pred_check_branch
    %19 = sbr.rel (0) target = $region13
  $region12: #{actor_forward.1} parent=0 // pred_region
    _
  $region13: #{actor_forward.1} parent=0 // pred_fallthru
    _
  // Predicated region
  $region14: #{actor_forward.1} parent=0 // pred_check
    _
  $region15: #{actor_forward.1} parent=0 // pred_check_branch
    %21 = sbr.rel (0) target = $region17
  $region16: #{actor_forward.1} parent=0 // pred_region
    _
  $region17: #{actor_forward.1} parent=0 // pred_fallthru
    _
  // Predicated region
  $region18: #{actor_forward.1} parent=0 // pred_check
    _
  $region19: #{actor_forward.1} parent=0 // pred_check_branch
    %23 = sbr.rel (0) target = $region21
  $region20: #{actor_forward.1} parent=0 // pred_region
    _
  $region21: #{actor_forward.1} parent=0 // pred_fallthru
    _
  // Predicated region
  $region22: #{actor_forward.1} parent=0 // pred_check
    _
  $region23: #{actor_forward.1} parent=0 // pred_check_branch
    %25 = sbr.rel (0) target = $region25
  $region24: #{actor_forward.1} parent=0 // pred_region
    _
  $region25: #{actor_forward.1} parent=0 // pred_fallthru
    _
  // Predicated region
  $region26: #{actor_forward.1} parent=0 // pred_check
    _
  $region27: #{actor_forward.1} parent=0 // pred_check_branch
    %27 = sbr.rel (0) target = $region29
  $region28: #{actor_forward.1} parent=0 // pred_region
    _
  $region29: #{actor_forward.1} parent=0 // pred_fallthru
    _
  // Predicated region
  $region30: #{actor_forward.1} parent=0 // pred_check
    _
  $region31: #{actor_forward.1} parent=0 // pred_check_branch
    %29 = sbr.rel (0) target = $region33
  $region32: #{actor_forward.1} parent=0 // pred_region
    _
  $region33: #{actor_forward.1} parent=0 // pred_fallthru
    _
  // Predicated region
  $region34: #{actor_forward.1} parent=0 // pred_check
    _
  $region35: #{actor_forward.1} parent=0 // pred_check_branch
    %31 = sbr.rel (0) target = $region37
  $region36: #{actor_forward.1} parent=0 // pred_region
    _
  $region37: #{actor_forward.1} parent=0 // pred_fallthru
    _
  %v32 = vld [vmem:[%s0] sm:$0xff]
  %v33 = vld [vmem:[%s0 + $0x8] sm:$0xff]
  %v34 = vld [vmem:[%s0 + $0x10] sm:$0xff]
  %v35 = vld [vmem:[%s0 + $0x18] sm:$0xff]
  %v36 = vld [vmem:[%s0 + $0x20] sm:$0xff]
  %v37 = vld [vmem:[%s0 + $0x28] sm:$0xff]
  %v38 = vld [vmem:[%s0 + $0x30] sm:$0xff]
  %v39 = vld [vmem:[%s0 + $0x38] sm:$0xff]
  %v40 = vld [vmem:[%s0 + $0x40] sm:$0xff]
  %v41 = vld [vmem:[%s0 + $0x48] sm:$0xff]
  %v42 = vld [vmem:[%s0 + $0x50] sm:$0xff]
  %v43 = vld [vmem:[%s0 + $0x58] sm:$0xff]
  %v44 = vld [vmem:[%s0 + $0x60] sm:$0xff]
  %v45 = vld [vmem:[%s0 + $0x68] sm:$0xff]
  %v46 = vld [vmem:[%s0 + $0x70] sm:$0xff]
  %v47 = vld [vmem:[%s0 + $0x78] sm:$0xff]
  %v48 = vld [vmem:[%s1] sm:$0xff]
  %v49 = vld [vmem:[%s1 + $0x8] sm:$0xff]
  %v50 = vld [vmem:[%s1 + $0x10] sm:$0xff]
  %v51 = vld [vmem:[%s1 + $0x18] sm:$0xff]
  %v52 = vld [vmem:[%s1 + $0x20] sm:$0xff]
  %v53 = vld [vmem:[%s1 + $0x28] sm:$0xff]
  %v54 = vld [vmem:[%s1 + $0x30] sm:$0xff]
  %v55 = vld [vmem:[%s1 + $0x38] sm:$0xff]
  %v56 = vld [vmem:[%s1 + $0x40] sm:$0xff]
  %v57 = vld [vmem:[%s1 + $0x48] sm:$0xff]
  %v58 = vld [vmem:[%s2] sm:$0xff]
  %v59 = vld [vmem:[%s2 + $0x8] sm:$0xff]
  %v60 = vld [vmem:[%s2 + $0x10] sm:$0xff]
  %v61 = vld [vmem:[%s2 + $0x18] sm:$0xff]
  %v62 = vld [vmem:[%s2 + $0x20] sm:$0xff]
  %v63 = vld [vmem:[%s2 + $0x28] sm:$0xff]
  %v64 = vld [vmem:[%s2 + $0x30] sm:$0xff]
  %v65 = vld [vmem:[%s2 + $0x38] sm:$0xff]
  %v66 = vld [vmem:[%s2 + $0x40] sm:$0xff]
  %v67 = vld [vmem:[%s2 + $0x48] sm:$0xff]
  %69 = vset.pattern.permute.xlu0 0
  %70 = vperm.xlu0 %69, %v58
  %v71 = vpop.permute.xlu0 %70
  %74 = vset.pattern.permute.xlu0 0
  %75 = vperm.xlu0 %74, %v59
  %v76 = vpop.permute.xlu0 %75
  %79 = vset.pattern.permute.xlu0 0
  %80 = vperm.xlu0 %79, %v60
  %v81 = vpop.permute.xlu0 %80
  %84 = vset.pattern.permute.xlu0 0
  %85 = vperm.xlu0 %84, %v61
  %v86 = vpop.permute.xlu0 %85
  %89 = vset.pattern.permute.xlu0 0
  %90 = vperm.xlu0 %89, %v62
  %v91 = vpop.permute.xlu0 %90
  %94 = vset.pattern.permute.xlu0 0
  %95 = vperm.xlu0 %94, %v63
  %v96 = vpop.permute.xlu0 %95
  %99 = vset.pattern.permute.xlu0 0
  %100 = vperm.xlu0 %99, %v64
  %v101 = vpop.permute.xlu0 %100
  %104 = vset.pattern.permute.xlu0 0
  %105 = vperm.xlu0 %104, %v65
  %v106 = vpop.permute.xlu0 %105
  %109 = vset.pattern.permute.xlu0 0
  %110 = vperm.xlu0 %109, %v66
  %v111 = vpop.permute.xlu0 %110
  %114 = vset.pattern.permute.xlu0 0
  %115 = vperm.xlu0 %114, %v67
  %v116 = vpop.permute.xlu0 %115
  %vm118 = vcmask 261120
  %v120 = vsel %vm118, %v48, 0
  %v123 = vsel %vm118, %v49, 0
  %v126 = vsel %vm118, %v50, 0
  %v129 = vsel %vm118, %v51, 0
  %v132 = vsel %vm118, %v52, 0
  %v135 = vsel %vm118, %v53, 0
  %v138 = vsel %vm118, %v54, 0
  %v141 = vsel %vm118, %v55, 0
  %v144 = vsel %vm118, %v56, 0
  %v147 = vsel %vm118, %v57, 0
  %v150 = vsel %vm118, %v32, 0
  %v153 = vsel %vm118, %v33, 0
  %v156 = vsel %vm118, %v34, 0
  %v159 = vsel %vm118, %v35, 0
  %v162 = vsel %vm118, %v36, 0
  %v165 = vsel %vm118, %v37, 0
  %v168 = vsel %vm118, %v38, 0
  %v171 = vsel %vm118, %v39, 0
  %v174 = vsel %vm118, %v40, 0
  %v177 = vsel %vm118, %v41, 0
  %v180 = vsel %vm118, %v42, 0
  %v183 = vsel %vm118, %v43, 0
  %v186 = vsel %vm118, %v44, 0
  %v189 = vsel %vm118, %v45, 0
  %v192 = vsel %vm118, %v46, 0
  %v195 = vsel %vm118, %v47, 0
  %197 = vmatprep.subr.mxu0 0.0
  %198 = vmatpush1.xpose.msra.mxu0 %v150
  %199 = vmatprep.subr.mxu0 0.0
  %200 = vmatpush1.xpose.msra.mxu0 %v153
  %201 = vmatprep.subr.mxu0 0.0
  %202 = vmatpush1.xpose.msra.mxu0 %v156
  %203 = vmatprep.subr.mxu0 0.0
  %204 = vmatpush1.xpose.msra.mxu0 %v159
  %205 = vmatprep.subr.mxu0 0.0
  %206 = vmatpush1.xpose.msra.mxu0 %v162
  %207 = vmatprep.subr.mxu0 0.0
  %208 = vmatpush1.xpose.msra.mxu0 %v165
  %209 = vmatprep.subr.mxu0 0.0
  %210 = vmatpush1.xpose.msra.mxu0 %v168
  %211 = vmatprep.subr.mxu0 0.0
  %212 = vmatpush1.xpose.msra.mxu0 %v171
  %213 = vmatprep.subr.mxu0 0.0
  %214 = vmatpush1.xpose.msra.mxu0 %v174
  %215 = vmatprep.subr.mxu0 0.0
  %216 = vmatpush1.xpose.msra.mxu0 %v177
  %217 = vmatprep.subr.mxu0 0.0
  %218 = vmatpush1.xpose.msra.mxu0 %v180
  %219 = vmatprep.subr.mxu0 0.0
  %220 = vmatpush1.xpose.msra.mxu0 %v183
  %221 = vmatprep.subr.mxu0 0.0
  %222 = vmatpush1.xpose.msra.mxu0 %v186
  %223 = vmatprep.subr.mxu0 0.0
  %224 = vmatpush1.xpose.msra.mxu0 %v189
  %225 = vmatprep.subr.mxu0 0.0
  %226 = vmatpush1.xpose.msra.mxu0 %v192
  %227 = vmatprep.subr.mxu0 0.0
  %228 = vmatpush1.xpose.msra.mxu0 %v195
  %229 = vmatprep.subr.mxu0 0.0
  %230 = vmatpush1.xpose.msra.mxu0 0.0
  %231 = vmatprep.subr.mxu0 0.0
  %232 = vmatpush1.xpose.msra.mxu0 0.0
  %233 = vmatprep.subr.mxu0 0.0
  %234 = vmatpush1.xpose.msra.mxu0 0.0
  %235 = vmatprep.subr.mxu0 0.0
  %236 = vmatpush1.xpose.msra.mxu0 0.0
  %237 = vmatprep.subr.mxu0 0.0
  %238 = vmatpush1.xpose.msra.mxu0 0.0
  %239 = vmatprep.subr.mxu0 0.0
  %240 = vmatpush1.xpose.msra.mxu0 0.0
  %241 = vmatprep.subr.mxu0 0.0
  %242 = vmatpush1.xpose.msra.mxu0 0.0
  %243 = vmatprep.subr.mxu0 0.0
  %244 = vmatpush1.xpose.msra.mxu0 0.0
  %245 = vmatprep.subr.mxu0 0.0
  %246 = vmatpush1.xpose.msra.mxu0 0.0
  %247 = vmatprep.subr.mxu0 0.0
  %248 = vmatpush1.xpose.msra.mxu0 0.0
  %249 = vmatprep.subr.mxu0 0.0
  %250 = vmatpush1.xpose.msra.mxu0 0.0
  %251 = vmatprep.subr.mxu0 0.0
  %252 = vmatpush1.xpose.msra.mxu0 0.0
  %253 = vmatprep.subr.mxu0 0.0
  %254 = vmatpush1.xpose.msra.mxu0 0.0
  %255 = vmatprep.subr.mxu0 0.0
  %256 = vmatpush1.xpose.msra.mxu0 0.0
  %257 = vmatprep.subr.mxu0 0.0
  %258 = vmatpush1.xpose.msra.mxu0 0.0
  %259 = vmatprep.subr.mxu0 0.0
  %260 = vmatpush1.xpose.msra.mxu0 0.0
  %261 = vmatprep.mubr.f32.mxu0 0.0
  %262 = vmatmul.mubr.f32.gmra.mrb[0].mxu0 %v120
  %v263 = vpop.f32.mrb[0].mxu0
  %v264 = vadd.f32 %v71, %v263
  %v265 = vpop.f32.mrb[0].mxu0
  %266 = vmatprep.mubr.f32.mxu0 0.0
  %267 = vmatmul.mubr.f32.gmra.mrb[0].mxu0 %v123
  %v268 = vpop.f32.mrb[0].mxu0
  %v269 = vadd.f32 %v76, %v268
  %v270 = vpop.f32.mrb[0].mxu0
  %271 = vmatprep.mubr.f32.mxu0 0.0
  %272 = vmatmul.mubr.f32.gmra.mrb[0].mxu0 %v126
  %v273 = vpop.f32.mrb[0].mxu0
  %v274 = vadd.f32 %v81, %v273
  %v275 = vpop.f32.mrb[0].mxu0
  %276 = vmatprep.mubr.f32.mxu0 0.0
  %277 = vmatmul.mubr.f32.gmra.mrb[0].mxu0 %v129
  %v278 = vpop.f32.mrb[0].mxu0
  %v279 = vadd.f32 %v86, %v278
  %v280 = vpop.f32.mrb[0].mxu0
  %281 = vmatprep.mubr.f32.mxu0 0.0
  %282 = vmatmul.mubr.f32.gmra.mrb[0].mxu0 %v132
  %v283 = vpop.f32.mrb[0].mxu0
  %v284 = vadd.f32 %v91, %v283
  %v285 = vpop.f32.mrb[0].mxu0
  %286 = vmatprep.mubr.f32.mxu0 0.0
  %287 = vmatmul.mubr.f32.gmra.mrb[0].mxu0 %v135
  %v288 = vpop.f32.mrb[0].mxu0
  %v289 = vadd.f32 %v96, %v288
  %v290 = vpop.f32.mrb[0].mxu0
  %291 = vmatprep.mubr.f32.mxu0 0.0
  %292 = vmatmul.mubr.f32.gmra.mrb[0].mxu0 %v138
  %v293 = vpop.f32.mrb[0].mxu0
  %v294 = vadd.f32 %v101, %v293
  %v295 = vpop.f32.mrb[0].mxu0
  %296 = vmatprep.mubr.f32.mxu0 0.0
  %297 = vmatmul.mubr.f32.gmra.mrb[0].mxu0 %v141
  %v298 = vpop.f32.mrb[0].mxu0
  %v299 = vadd.f32 %v106, %v298
  %v300 = vpop.f32.mrb[0].mxu0
  %301 = vmatprep.mubr.f32.mxu0 0.0
  %302 = vmatmul.mubr.f32.gmra.mrb[0].mxu0 %v144
  %v303 = vpop.f32.mrb[0].mxu0
  %v304 = vadd.f32 %v111, %v303
  %v305 = vpop.f32.mrb[0].mxu0
  %306 = vmatprep.mubr.f32.mxu0 0.0
  %307 = vmatmul.mubr.f32.gmra.mrb[0].mxu0 %v147
  %v308 = vpop.f32.mrb[0].mxu0
  %v309 = vadd.f32 %v116, %v308
  %v310 = vpop.f32.mrb[0].mxu0
  %311 = vdwg.mxu0
  %v312 = vtanh.pop %v264
  %v313 = vtanh.pop %v269
  %v314 = vtanh.pop %v274
  %v315 = vtanh.pop %v279
  %v316 = vtanh.pop %v284
  %v317 = vtanh.pop %v289
  %v318 = vtanh.pop %v294
  %v319 = vtanh.pop %v299
  %v320 = vtanh.pop %v304
  %v321 = vtanh.pop %v309
  %v322 = vld [vmem:[%s3] sm:$0xff]
  %v323 = vld [vmem:[%s3 + $0x8] sm:$0xff]
  %v324 = vld [vmem:[%s3 + $0x10] sm:$0xff]
  %v325 = vld [vmem:[%s3 + $0x18] sm:$0xff]
  %v326 = vld [vmem:[%s3 + $0x20] sm:$0xff]
  %v327 = vld [vmem:[%s3 + $0x28] sm:$0xff]
  %v328 = vld [vmem:[%s3 + $0x30] sm:$0xff]
  %v329 = vld [vmem:[%s3 + $0x38] sm:$0xff]
  %v330 = vld [vmem:[%s4] sm:$0xff]
  %v331 = vld [vmem:[%s4 + $0x8] sm:$0xff]
  %v332 = vld [vmem:[%s4 + $0x10] sm:$0xff]
  %v333 = vld [vmem:[%s4 + $0x18] sm:$0xff]
  %v334 = vld [vmem:[%s4 + $0x20] sm:$0xff]
  %v335 = vld [vmem:[%s4 + $0x28] sm:$0xff]
  %v336 = vld [vmem:[%s4 + $0x30] sm:$0xff]
  %v337 = vld [vmem:[%s4 + $0x38] sm:$0xff]
  %339 = vset.pattern.permute.xlu0 0
  %340 = vperm.xlu0 %339, %v330
  %v341 = vpop.permute.xlu0 %340
  %344 = vset.pattern.permute.xlu0 0
  %345 = vperm.xlu0 %344, %v331
  %v346 = vpop.permute.xlu0 %345
  %349 = vset.pattern.permute.xlu0 0
  %350 = vperm.xlu0 %349, %v332
  %v351 = vpop.permute.xlu0 %350
  %354 = vset.pattern.permute.xlu0 0
  %355 = vperm.xlu0 %354, %v333
  %v356 = vpop.permute.xlu0 %355
  %359 = vset.pattern.permute.xlu0 0
  %360 = vperm.xlu0 %359, %v334
  %v361 = vpop.permute.xlu0 %360
  %364 = vset.pattern.permute.xlu0 0
  %365 = vperm.xlu0 %364, %v335
  %v366 = vpop.permute.xlu0 %365
  %369 = vset.pattern.permute.xlu0 0
  %370 = vperm.xlu0 %369, %v336
  %v371 = vpop.permute.xlu0 %370
  %374 = vset.pattern.permute.xlu0 0
  %375 = vperm.xlu0 %374, %v337
  %v376 = vpop.permute.xlu0 %375
  %vm378 = vcmask 654336
  %v380 = vsel %vm378, %v322, 0
  %v383 = vsel %vm378, %v323, 0
  %v386 = vsel %vm378, %v324, 0
  %v389 = vsel %vm378, %v325, 0
  %v392 = vsel %vm378, %v326, 0
  %v395 = vsel %vm378, %v327, 0
  %v398 = vsel %vm378, %v328, 0
  %v401 = vsel %vm378, %v329, 0
  %403 = vmatprep.subr.mxu0 0.0
  %404 = vmatpush1.msra.mxu0 %v312
  %405 = vmatprep.subr.mxu0 0.0
  %406 = vmatpush1.msra.mxu0 %v313
  %407 = vmatprep.subr.mxu0 0.0
  %408 = vmatpush1.msra.mxu0 %v314
  %409 = vmatprep.subr.mxu0 0.0
  %410 = vmatpush1.msra.mxu0 %v315
  %411 = vmatprep.subr.mxu0 0.0
  %412 = vmatpush1.msra.mxu0 %v316
  %413 = vmatprep.subr.mxu0 0.0
  %414 = vmatpush1.msra.mxu0 %v317
  %415 = vmatprep.subr.mxu0 0.0
  %416 = vmatpush1.msra.mxu0 %v318
  %417 = vmatprep.subr.mxu0 0.0
  %418 = vmatpush1.msra.mxu0 %v319
  %419 = vmatprep.subr.mxu0 0.0
  %420 = vmatpush1.msra.mxu0 %v320
  %421 = vmatprep.subr.mxu0 0.0
  %422 = vmatpush1.msra.mxu0 %v321
  %423 = vmatprep.subr.mxu0 0.0
  %424 = vmatpush1.msra.mxu0 0.0
  %425 = vmatprep.subr.mxu0 0.0
  %426 = vmatpush1.msra.mxu0 0.0
  %427 = vmatprep.subr.mxu0 0.0
  %428 = vmatpush1.msra.mxu0 0.0
  %429 = vmatprep.subr.mxu0 0.0
  %430 = vmatpush1.msra.mxu0 0.0
  %431 = vmatprep.subr.mxu0 0.0
  %432 = vmatpush1.msra.mxu0 0.0
  %433 = vmatprep.subr.mxu0 0.0
  %434 = vmatpush1.msra.mxu0 0.0
  %435 = vmatprep.subr.mxu0 0.0
  %436 = vmatpush1.msra.mxu0 0.0
  %437 = vmatprep.subr.mxu0 0.0
  %438 = vmatpush1.msra.mxu0 0.0
  %439 = vmatprep.subr.mxu0 0.0
  %440 = vmatpush1.msra.mxu0 0.0
  %441 = vmatprep.subr.mxu0 0.0
  %442 = vmatpush1.msra.mxu0 0.0
  %443 = vmatprep.subr.mxu0 0.0
  %444 = vmatpush1.msra.mxu0 0.0
  %445 = vmatprep.subr.mxu0 0.0
  %446 = vmatpush1.msra.mxu0 0.0
  %447 = vmatprep.subr.mxu0 0.0
  %448 = vmatpush1.msra.mxu0 0.0
  %449 = vmatprep.subr.mxu0 0.0
  %450 = vmatpush1.msra.mxu0 0.0
  %451 = vmatprep.subr.mxu0 0.0
  %452 = vmatpush1.msra.mxu0 0.0
  %453 = vmatprep.subr.mxu0 0.0
  %454 = vmatpush1.msra.mxu0 0.0
  %455 = vmatprep.subr.mxu0 0.0
  %456 = vmatpush1.msra.mxu0 0.0
  %457 = vmatprep.subr.mxu0 0.0
  %458 = vmatpush1.msra.mxu0 0.0
  %459 = vmatprep.subr.mxu0 0.0
  %460 = vmatpush1.msra.mxu0 0.0
  %461 = vmatprep.subr.mxu0 0.0
  %462 = vmatpush1.msra.mxu0 0.0
  %463 = vmatprep.subr.mxu0 0.0
  %464 = vmatpush1.msra.mxu0 0.0
  %465 = vmatprep.subr.mxu0 0.0
  %466 = vmatpush1.msra.mxu0 0.0
  %467 = vmatprep.mubr.f32.mxu0 0.0
  %468 = vmatmul.mubr.f32.gmra.mrb[0].mxu0 %v380
  %v469 = vpop.f32.mrb[0].mxu0
  %v470 = vadd.f32 %v341, %v469
  %v471 = vpop.f32.mrb[0].mxu0
  %472 = vmatprep.mubr.f32.mxu0 0.0
  %473 = vmatmul.mubr.f32.gmra.mrb[0].mxu0 %v383
  %v474 = vpop.f32.mrb[0].mxu0
  %v475 = vadd.f32 %v346, %v474
  %v476 = vpop.f32.mrb[0].mxu0
  %477 = vmatprep.mubr.f32.mxu0 0.0
  %478 = vmatmul.mubr.f32.gmra.mrb[0].mxu0 %v386
  %v479 = vpop.f32.mrb[0].mxu0
  %v480 = vadd.f32 %v351, %v479
  %v481 = vpop.f32.mrb[0].mxu0
  %482 = vmatprep.mubr.f32.mxu0 0.0
  %483 = vmatmul.mubr.f32.gmra.mrb[0].mxu0 %v389
  %v484 = vpop.f32.mrb[0].mxu0
  %v485 = vadd.f32 %v356, %v484
  %v486 = vpop.f32.mrb[0].mxu0
  %487 = vmatprep.mubr.f32.mxu0 0.0
  %488 = vmatmul.mubr.f32.gmra.mrb[0].mxu0 %v392
  %v489 = vpop.f32.mrb[0].mxu0
  %v490 = vadd.f32 %v361, %v489
  %v491 = vpop.f32.mrb[0].mxu0
  %492 = vmatprep.mubr.f32.mxu0 0.0
  %493 = vmatmul.mubr.f32.gmra.mrb[0].mxu0 %v395
  %v494 = vpop.f32.mrb[0].mxu0
  %v495 = vadd.f32 %v366, %v494
  %v496 = vpop.f32.mrb[0].mxu0
  %497 = vmatprep.mubr.f32.mxu0 0.0
  %498 = vmatmul.mubr.f32.gmra.mrb[0].mxu0 %v398
  %v499 = vpop.f32.mrb[0].mxu0
  %v500 = vadd.f32 %v371, %v499
  %v501 = vpop.f32.mrb[0].mxu0
  %502 = vmatprep.mubr.f32.mxu0 0.0
  %503 = vmatmul.mubr.f32.gmra.mrb[0].mxu0 %v401
  %v504 = vpop.f32.mrb[0].mxu0
  %v505 = vadd.f32 %v376, %v504
  %v506 = vpop.f32.mrb[0].mxu0
  %507 = vdwg.mxu0
  %v508 = vtanh.pop %v470
  %v509 = vtanh.pop %v475
  %v510 = vtanh.pop %v480
  %v511 = vtanh.pop %v485
  %v512 = vtanh.pop %v490
  %v513 = vtanh.pop %v495
  %v514 = vtanh.pop %v500
  %v515 = vtanh.pop %v505
  %v516 = vld [vmem:[%s5] sm:$0xff]
  %v517 = vld [vmem:[%s5 + $0x8] sm:$0xff]
  %v518 = vld [vmem:[%s6] sm:$0xff]
  %v519 = vld [vmem:[%s6 + $0x8] sm:$0xff]
  %521 = vset.pattern.permute.xlu0 0
  %522 = vperm.xlu0 %521, %v518
  %v523 = vpop.permute.xlu0 %522
  %526 = vset.pattern.permute.xlu0 0
  %527 = vperm.xlu0 %526, %v519
  %v528 = vpop.permute.xlu0 %527
  %vm530 = vcmask 523264
  %v532 = vsel %vm530, %v516, 0
  %v535 = vsel %vm530, %v517, 0
  %537 = vmatprep.subr.mxu0 0.0
  %538 = vmatpush1.msra.mxu0 %v508
  %539 = vmatprep.subr.mxu0 0.0
  %540 = vmatpush1.msra.mxu0 %v509
  %541 = vmatprep.subr.mxu0 0.0
  %542 = vmatpush1.msra.mxu0 %v510
  %543 = vmatprep.subr.mxu0 0.0
  %544 = vmatpush1.msra.mxu0 %v511
  %545 = vmatprep.subr.mxu0 0.0
  %546 = vmatpush1.msra.mxu0 %v512
  %547 = vmatprep.subr.mxu0 0.0
  %548 = vmatpush1.msra.mxu0 %v513
  %549 = vmatprep.subr.mxu0 0.0
  %550 = vmatpush1.msra.mxu0 %v514
  %551 = vmatprep.subr.mxu0 0.0
  %552 = vmatpush1.msra.mxu0 %v515
  %553 = vmatprep.subr.mxu0 0.0
  %554 = vmatpush1.msra.mxu0 0.0
  %555 = vmatprep.subr.mxu0 0.0
  %556 = vmatpush1.msra.mxu0 0.0
  %557 = vmatprep.subr.mxu0 0.0
  %558 = vmatpush1.msra.mxu0 0.0
  %559 = vmatprep.subr.mxu0 0.0
  %560 = vmatpush1.msra.mxu0 0.0
  %561 = vmatprep.subr.mxu0 0.0
  %562 = vmatpush1.msra.mxu0 0.0
  %563 = vmatprep.subr.mxu0 0.0
  %564 = vmatpush1.msra.mxu0 0.0
  %565 = vmatprep.subr.mxu0 0.0
  %566 = vmatpush1.msra.mxu0 0.0
  %567 = vmatprep.subr.mxu0 0.0
  %568 = vmatpush1.msra.mxu0 0.0
  %569 = vmatprep.subr.mxu0 0.0
  %570 = vmatpush1.msra.mxu0 0.0
  %571 = vmatprep.subr.mxu0 0.0
  %572 = vmatpush1.msra.mxu0 0.0
  %573 = vmatprep.subr.mxu0 0.0
  %574 = vmatpush1.msra.mxu0 0.0
  %575 = vmatprep.subr.mxu0 0.0
  %576 = vmatpush1.msra.mxu0 0.0
  %577 = vmatprep.subr.mxu0 0.0
  %578 = vmatpush1.msra.mxu0 0.0
  %579 = vmatprep.subr.mxu0 0.0
  %580 = vmatpush1.msra.mxu0 0.0
  %581 = vmatprep.subr.mxu0 0.0
  %582 = vmatpush1.msra.mxu0 0.0
  %583 = vmatprep.subr.mxu0 0.0
  %584 = vmatpush1.msra.mxu0 0.0
  %585 = vmatprep.subr.mxu0 0.0
  %586 = vmatpush1.msra.mxu0 0.0
  %587 = vmatprep.subr.mxu0 0.0
  %588 = vmatpush1.msra.mxu0 0.0
  %589 = vmatprep.subr.mxu0 0.0
  %590 = vmatpush1.msra.mxu0 0.0
  %591 = vmatprep.subr.mxu0 0.0
  %592 = vmatpush1.msra.mxu0 0.0
  %593 = vmatprep.subr.mxu0 0.0
  %594 = vmatpush1.msra.mxu0 0.0
  %595 = vmatprep.subr.mxu0 0.0
  %596 = vmatpush1.msra.mxu0 0.0
  %597 = vmatprep.subr.mxu0 0.0
  %598 = vmatpush1.msra.mxu0 0.0
  %599 = vmatprep.subr.mxu0 0.0
  %600 = vmatpush1.msra.mxu0 0.0
  %601 = vmatprep.mubr.f32.mxu0 0.0
  %602 = vmatmul.mubr.f32.gmra.mrb[0].mxu0 %v532
  %v603 = vpop.f32.mrb[0].mxu0
  %v604 = vadd.f32 %v523, %v603
  %v605 = vpop.f32.mrb[0].mxu0
  %606 = vmatprep.mubr.f32.mxu0 0.0
  %607 = vmatmul.mubr.f32.gmra.mrb[0].mxu0 %v535
  %v608 = vpop.f32.mrb[0].mxu0
  %v609 = vadd.f32 %v528, %v608
  %v610 = vpop.f32.mrb[0].mxu0
  %611 = vdwg.mxu0
  %v612 = vtanh.pop %v604
  %v613 = vtanh.pop %v609
  %v614 = vld [vmem:[%s7] sm:$0xf]
  %v615 = vld [vmem:[%s8] sm:$0xf]
  %617 = vset.pattern.permute.xlu0 0
  %618 = vperm.xlu0 %617, %v615
  %v619 = vpop.permute.xlu0 %618
  %vm621 = vcmask 130048
  %v623 = vsel %vm621, %v614, 0
  %625 = vmatprep.subr.mxu0 0.0
  %626 = vmatpush1.msra.mxu0 %v612
  %627 = vmatprep.subr.mxu0 0.0
  %628 = vmatpush1.msra.mxu0 %v613
  %629 = vmatprep.subr.mxu0 0.0
  %630 = vmatpush1.msra.mxu0 0.0
  %631 = vmatprep.subr.mxu0 0.0
  %632 = vmatpush1.msra.mxu0 0.0
  %633 = vmatprep.subr.mxu0 0.0
  %634 = vmatpush1.msra.mxu0 0.0
  %635 = vmatprep.subr.mxu0 0.0
  %636 = vmatpush1.msra.mxu0 0.0
  %637 = vmatprep.subr.mxu0 0.0
  %638 = vmatpush1.msra.mxu0 0.0
  %639 = vmatprep.subr.mxu0 0.0
  %640 = vmatpush1.msra.mxu0 0.0
  %641 = vmatprep.subr.mxu0 0.0
  %642 = vmatpush1.msra.mxu0 0.0
  %643 = vmatprep.subr.mxu0 0.0
  %644 = vmatpush1.msra.mxu0 0.0
  %645 = vmatprep.subr.mxu0 0.0
  %646 = vmatpush1.msra.mxu0 0.0
  %647 = vmatprep.subr.mxu0 0.0
  %648 = vmatpush1.msra.mxu0 0.0
  %649 = vmatprep.subr.mxu0 0.0
  %650 = vmatpush1.msra.mxu0 0.0
  %651 = vmatprep.subr.mxu0 0.0
  %652 = vmatpush1.msra.mxu0 0.0
  %653 = vmatprep.subr.mxu0 0.0
  %654 = vmatpush1.msra.mxu0 0.0
  %655 = vmatprep.subr.mxu0 0.0
  %656 = vmatpush1.msra.mxu0 0.0
  %657 = vmatprep.subr.mxu0 0.0
  %658 = vmatpush1.msra.mxu0 0.0
  %659 = vmatprep.subr.mxu0 0.0
  %660 = vmatpush1.msra.mxu0 0.0
  %661 = vmatprep.subr.mxu0 0.0
  %662 = vmatpush1.msra.mxu0 0.0
  %663 = vmatprep.subr.mxu0 0.0
  %664 = vmatpush1.msra.mxu0 0.0
  %665 = vmatprep.subr.mxu0 0.0
  %666 = vmatpush1.msra.mxu0 0.0
  %667 = vmatprep.subr.mxu0 0.0
  %668 = vmatpush1.msra.mxu0 0.0
  %669 = vmatprep.subr.mxu0 0.0
  %670 = vmatpush1.msra.mxu0 0.0
  %671 = vmatprep.subr.mxu0 0.0
  %672 = vmatpush1.msra.mxu0 0.0
  %673 = vmatprep.subr.mxu0 0.0
  %674 = vmatpush1.msra.mxu0 0.0
  %675 = vmatprep.subr.mxu0 0.0
  %676 = vmatpush1.msra.mxu0 0.0
  %677 = vmatprep.subr.mxu0 0.0
  %678 = vmatpush1.msra.mxu0 0.0
  %679 = vmatprep.subr.mxu0 0.0
  %680 = vmatpush1.msra.mxu0 0.0
  %681 = vmatprep.subr.mxu0 0.0
  %682 = vmatpush1.msra.mxu0 0.0
  %683 = vmatprep.subr.mxu0 0.0
  %684 = vmatpush1.msra.mxu0 0.0
  %685 = vmatprep.subr.mxu0 0.0
  %686 = vmatpush1.msra.mxu0 0.0
  %687 = vmatprep.subr.mxu0 0.0
  %688 = vmatpush1.msra.mxu0 0.0
  %689 = vmatprep.mubr.f32.mxu0 0.0
  %690 = vmatmul.mubr.f32.gmra.mrb[0].mxu0 %v623
  %v691 = vpop.f32.mrb[0].mxu0
  %v692 = vadd.f32 %v619, %v691
  %v693 = vpop.f32.mrb[0].mxu0
  %694 = vdwg.mxu0
  %695 = vst [vmem:[%s9] sm:$0xf] %v692
  // Predicated region
  $region38: #{actor_forward.1} parent=0 // pred_check
    _
  $region39: #{actor_forward.1} parent=0 // pred_check_branch
    %697 = sbr.rel (0) target = $region41
  $region40: #{actor_forward.1} parent=0 // pred_region
    _
  $region41: #{actor_forward.1} parent=0 // pred_fallthru
    _
  // Predicated region
  $region42: #{actor_forward.1} parent=0 // pred_check
    _
  $region43: #{actor_forward.1} parent=0 // pred_check_branch
    %699 = sbr.rel (0) target = $region45
  $region44: #{actor_forward.1} parent=0 // pred_region
    _
  $region45: #{actor_forward.1} parent=0 // pred_fallthru
    _

</llo_original>
